<compile_context>
chip_gen: v7x
topology: tpu7x:2x2x1
jax: 0.10.0
libtpu: 0.0.40
codegen_flags: <defaults>
</compile_context>

<pallas_src>
import jax
import jax.numpy as jnp
from jax.experimental import pallas as pl
from jax.experimental.pallas import tpu as pltpu


NUM_CLASSES = 55
HIDDEN = 256
CLASS_PAD = 128          # lane-dense padded classifier width (55 -> 128)
NEG_INF = -1e30          # pad-lane bias; representable in f32 and bf16
BN_EPS = 1e-5


# ---------------------------------------------------------------------------
# Fused kernel: in-kernel bf16 cast -> (BN-folded) Linear+ReLU -> Linear+ReLU
#               -> Linear(256 -> 128pad) -> stable LogSoftmax -> bf16 store.
# ---------------------------------------------------------------------------
def net_head_kernel(x_ref, w1_ref, b1_ref, w2_ref, b2_ref, wf_ref, bf_ref, out_ref):
    # x_ref: (TILE_B, F) f32; weights bf16; biases f32; out bf16 (TILE_B, 128).
    xb = x_ref[...].astype(w1_ref.dtype)          # bf16 cast fused into the kernel
    h = jnp.dot(xb, w1_ref[...],
                preferred_element_type=jnp.float32) + b1_ref[...]
    h = jnp.maximum(h, 0.0)

    h = jnp.dot(h.astype(w2_ref.dtype), w2_ref[...],
                preferred_element_type=jnp.float32) + b2_ref[...]
    h = jnp.maximum(h, 0.0)

    # (args.dropout is None -> dropout layers are absent in the forward pass)

    logits = jnp.dot(h.astype(wf_ref.dtype), wf_ref[...],
                     preferred_element_type=jnp.float32) + bf_ref[...]
    # Padded class lanes carry bias = -1e30, so exp(shifted) ~ 0 there and the
    # log-softmax of the 55 real classes is unaffected.
    m = jnp.max(logits, axis=1, keepdims=True)
    shifted = logits - m
    lse = jnp.log(jnp.sum(jnp.exp(shifted), axis=1, keepdims=True))
    out_ref[...] = (shifted - lse).astype(out_ref.dtype)


# ---------------------------------------------------------------------------
# Tiling / resource helpers
# ---------------------------------------------------------------------------
def _round_up(x, m):
    return ((x + m - 1) // m) * m


def _choose_tile_b(batch, max_tile=1024):
    """Batch tile: as large as possible (amortizes ~0.35us/step overhead) while
    keeping >= 2 grid steps when B allows it so both v7x TensorCores get work."""
    if batch <= 8:
        return batch                       # block == full dim is always legal
    return min(max_tile, _round_up(pl.cdiv(batch, 2), 8))


def _vmem_limit_bytes(tile_b, f, hidden, c_pad):
    # Weights/biases are resident but double-buffered by default; activations are
    # double-buffered (tile_b, f) f32 in and (tile_b, c_pad) bf16 out; plus
    # intermediate f32 activations/logits.  1.25x margin, clamp to 48 MiB so the
    # request is safe against v7x's 64 MiB per-TC VMEM.
    weights = (f * hidden + hidden * hidden + hidden * c_pad) * 2 \
        + (2 * hidden + c_pad) * 4
    bufs = 2 * weights + 2 * tile_b * f * 4 + 2 * tile_b * c_pad * 2
    interm = tile_b * (2 * hidden + 2 * c_pad) * 4
    total = int(1.25 * (bufs + interm))
    return int(min(max(total, 16 * 1024 * 1024), 48 * 1024 * 1024))


# ---------------------------------------------------------------------------
# Wrapper
# ---------------------------------------------------------------------------
def net_forward(x, packed):
    """x: (B, F) f32 features (output of SphericalCNN). Returns (B, 55) bf16 log-probs."""
    B, F = x.shape
    assert packed["w1"].shape[0] == F, "feature dim mismatch with packed w1"

    tile_b = _choose_tile_b(B)
    grid = (pl.cdiv(B, tile_b),)

    batch_map = lambda i: (i, 0)
    const_map = lambda i: (0, 0)       # weights stay resident across the batch grid

    in_specs = [
        pl.BlockSpec((tile_b, F), batch_map),          # x (f32, unpadded feature dim)
        pl.BlockSpec((F, HIDDEN), const_map),          # w1 (BN folded, bf16)
        pl.BlockSpec((1, HIDDEN), const_map),          # b1 (BN folded, f32)
        pl.BlockSpec((HIDDEN, HIDDEN), const_map),     # w2
        pl.BlockSpec((1, HIDDEN), const_map),          # b2
        pl.BlockSpec((HIDDEN, CLASS_PAD), const_map),  # wf (padded to 128)
        pl.BlockSpec((1, CLASS_PAD), const_map),       # bf (padded with -1e30)
    ]
    out_specs = pl.BlockSpec((tile_b, CLASS_PAD), batch_map)

    weight_bytes = (F * HIDDEN + HIDDEN * HIDDEN + HIDDEN * CLASS_PAD) * 2 \
        + (2 * HIDDEN + CLASS_PAD) * 4
    cost = pl.CostEstimate(
        flops=2 * B * (F * HIDDEN + HIDDEN * HIDDEN + HIDDEN * CLASS_PAD),
        transcendentals=B * (CLASS_PAD + 1),
        bytes_accessed=B * F * 4 + weight_bytes + B * CLASS_PAD * 2,
    )

    fn = pl.pallas_call(
        net_head_kernel,
        out_shape=jax.ShapeDtypeStruct((B, CLASS_PAD), jnp.bfloat16),
        grid=grid,
        in_specs=in_specs,
        out_specs=out_specs,
        compiler_params=pltpu.CompilerParams(
            dimension_semantics=("parallel",),
            vmem_limit_bytes=_vmem_limit_bytes(tile_b, F, HIDDEN, CLASS_PAD),
        ),
        cost_estimate=cost,
    )
    out = fn(x, packed["w1"], packed["b1"], packed["w2"], packed["b2"],
             packed["wf"], packed["bf"])
    # Pad lanes (55..127) are discarded here; consumers that can take the padded
    # slab directly should skip this slice.
    return out[:, :NUM_CLASSES]


# ---------------------------------------------------------------------------
# Offline parameter preparation: fold BN into fc1, pad classifier, cast to bf16.
# ---------------------------------------------------------------------------
def fold_and_pack(params, weight_dtype=jnp.bfloat16):
    scale = params["bn_gamma"] * jax.lax.rsqrt(params["bn_var"] + BN_EPS)  # (1, F)
    shift = params["bn_beta"] - params["bn_mean"] * scale                  # (1, F)

    w1 = params["w1"] * scale.reshape(-1, 1)            # (F, H)
    b1 = params["b1"] + shift @ params["w1"]            # (1, H)

    C = params["wf"].shape[1]
    wf = jnp.pad(params["wf"], ((0, 0), (0, CLASS_PAD - C)))
    bf = jnp.pad(params["bf"], ((0, 0), (0, CLASS_PAD - C)), constant_values=NEG_INF)

    return dict(
        w1=w1.astype(weight_dtype), b1=b1.astype(jnp.float32),
        w2=params["w2"].astype(weight_dtype), b2=params["b2"].astype(jnp.float32),
        wf=wf.astype(weight_dtype), bf=bf.astype(jnp.float32),
    )


# ---------------------------------------------------------------------------
# Deterministic parameter construction (shapes implied by Net.__init__; nfc=2)
# ---------------------------------------------------------------------------
def make_params(key, feature_dim, hidden=HIDDEN, num_classes=NUM_CLASSES):
    ks = jax.random.split(key, 8)

    def linear(kw, kb, fan_in, fan_out):
        bound = 1.0 / jnp.sqrt(fan_in)
        w = jax.random.uniform(kw, (fan_in, fan_out), jnp.float32, -bound, bound)
        b = jax.random.uniform(kb, (1, fan_out), jnp.float32, -bound, bound)
        return w, b

    w1, b1 = linear(ks[0], ks[1], feature_dim, hidden)   # fcs[0]: output_length -> 256
    w2, b2 = linear(ks[2], ks[3], hidden, hidden)        # fcs[1]: 256 -> 256
    wf, bf = linear(ks[4], ks[5], hidden, num_classes)   # final:  256 -> 55

    return dict(
        bn_gamma=jnp.ones((1, feature_dim), jnp.float32),
        bn_beta=jnp.zeros((1, feature_dim), jnp.float32),
        bn_mean=0.1 * jax.random.normal(ks[6], (1, feature_dim), jnp.float32),
        bn_var=jnp.ones((1, feature_dim), jnp.float32)
        + 0.05 * jax.random.uniform(ks[7], (1, feature_dim), jnp.float32),
        w1=w1, b1=b1, w2=w2, b2=b2, wf=wf, bf=bf,
    )


# ---------------------------------------------------------------------------
# Pure-JAX references
# ---------------------------------------------------------------------------
def net_forward_ref_f32(x, p):
    xb = (x - p["bn_mean"]) * jax.lax.rsqrt(p["bn_var"] + BN_EPS) * p["bn_gamma"] + p["bn_beta"]
    h = jnp.maximum(xb @ p["w1"] + p["b1"], 0.0)
    h = jnp.maximum(h @ p["w2"] + p["b2"], 0.0)
    logits = h @ p["wf"] + p["bf"]
    return jax.nn.log_softmax(logits, axis=1)


def net_forward_ref_packed(x, packed):
    xb = x.astype(jnp.bfloat16)
    h = jnp.dot(xb, packed["w1"], preferred_element_type=jnp.float32) + packed["b1"]
    h = jnp.maximum(h, 0.0)
    h = jnp.dot(h.astype(jnp.bfloat16), packed["w2"],
                preferred_element_type=jnp.float32) + packed["b2"]
    h = jnp.maximum(h, 0.0)
    logits = jnp.dot(h.astype(jnp.bfloat16), packed["wf"],
                     preferred_element_type=jnp.float32) + packed["bf"]
    return jax.nn.log_softmax(logits, axis=1)[:, :NUM_CLASSES]


if __name__ == "__main__":
    key = jax.random.PRNGKey(0)
    k_x, k_p = jax.random.split(key)

    # Small demo: batch=24 "meshes", SphericalCNN.output_length = 192 features.
    # (B=24, tile_b=16 -> 2 grid steps incl. a partial trailing tile; F=192 is
    # deliberately not a multiple of 128 to exercise the unpadded feature path.)
    B, F = 24, 192
    x = jax.random.normal(k_x, (B, F), jnp.float32)
    params = make_params(k_p, feature_dim=F)
    packed = fold_and_pack(params)

    out = net_forward(x, packed)
    out = jax.block_until_ready(out)
    assert out.shape == (B, NUM_CLASSES)

    out_f32 = out.astype(jnp.float32)

    # Rows must be valid log-probability distributions (bf16 output -> loose atol).
    assert jnp.allclose(jnp.exp(out_f32).sum(axis=1), 1.0, atol=2e-2)

    # Match the bf16-weight reference tightly-ish and the full-f32 reference loosely.
    ref_bf16 = net_forward_ref_packed(x, packed)
    ref_f32 = net_forward_ref_f32(x, params)
    assert jnp.allclose(out_f32, ref_bf16, atol=5e-2, rtol=2e-2)
    assert jnp.allclose(out_f32, ref_f32, atol=1e-1, rtol=5e-2)

    print("KERNEL_OK")
</pallas_src>

<mosaic_0001>
module attributes {stable_mosaic.version = 11 : i64} {
  func.func @net_head_kernel(%arg0: i32, %arg1: memref<16x192xf32, #tpu.memory_space<vmem>>, %arg2: memref<192x256xbf16, #tpu.memory_space<vmem>>, %arg3: memref<1x256xf32, #tpu.memory_space<vmem>>, %arg4: memref<256x256xbf16, #tpu.memory_space<vmem>>, %arg5: memref<1x256xf32, #tpu.memory_space<vmem>>, %arg6: memref<256x128xbf16, #tpu.memory_space<vmem>>, %arg7: memref<1x128xf32, #tpu.memory_space<vmem>>, %arg8: memref<16x128xbf16, #tpu.memory_space<vmem>>) attributes {dimension_semantics = [#tpu.dimension_semantics<parallel>], iteration_bounds = array<i64: 2>, scalar_prefetch = 0 : i64, scratch_operands = 0 : i64, tpu.core_type = #tpu.core_type<tc>, window_params = [{transform_indices = @transform_0, window_bounds = array<i64: 16, 192>}, {pipeline_mode = #tpu.pipeline_mode<synchronous>, transform_indices = @transform_1, window_bounds = array<i64: 192, 256>}, {pipeline_mode = #tpu.pipeline_mode<synchronous>, transform_indices = @transform_2, window_bounds = array<i64: 1, 256>}, {pipeline_mode = #tpu.pipeline_mode<synchronous>, transform_indices = @transform_3, window_bounds = array<i64: 256, 256>}, {pipeline_mode = #tpu.pipeline_mode<synchronous>, transform_indices = @transform_4, window_bounds = array<i64: 1, 256>}, {pipeline_mode = #tpu.pipeline_mode<synchronous>, transform_indices = @transform_5, window_bounds = array<i64: 256, 128>}, {pipeline_mode = #tpu.pipeline_mode<synchronous>, transform_indices = @transform_6, window_bounds = array<i64: 1, 128>}, {transform_indices = @transform_7, window_bounds = array<i64: 16, 128>}]} {
    %c0 = arith.constant 0 : index
    %c0_0 = arith.constant 0 : index
    %0 = vector.load %arg1[%c0, %c0_0] : memref<16x192xf32, #tpu.memory_space<vmem>>, vector<16x192xf32>
    %1 = arith.truncf %0 : vector<16x192xf32> to vector<16x192xbf16>
    %c0_1 = arith.constant 0 : index
    %c0_2 = arith.constant 0 : index
    %2 = vector.load %arg2[%c0_1, %c0_2] : memref<192x256xbf16, #tpu.memory_space<vmem>>, vector<192x256xbf16>
    %cst = arith.constant dense<0.000000e+00> : vector<16x256xf32>
    %3 = tpu.matmul %1, %2, %cst {dimension_numbers = #tpu.dot_dimension_numbers<[1], [0], [0], [1], [0, 0, 1, 1], [], []>} : vector<16x192xbf16>, vector<192x256xbf16>, vector<16x256xf32> -> vector<16x256xf32>
    %c0_3 = arith.constant 0 : index
    %c0_4 = arith.constant 0 : index
    %4 = vector.load %arg3[%c0_3, %c0_4] : memref<1x256xf32, #tpu.memory_space<vmem>>, vector<1x256xf32>
    %5 = vector.broadcast %4 : vector<1x256xf32> to vector<16x256xf32>
    %6 = arith.addf %3, %5 : vector<16x256xf32>
    %cst_5 = arith.constant 0.000000e+00 : f32
    %7 = vector.broadcast %cst_5 : f32 to vector<16x256xf32>
    %8 = arith.maximumf %6, %7 : vector<16x256xf32>
    %9 = arith.truncf %8 : vector<16x256xf32> to vector<16x256xbf16>
    %c0_6 = arith.constant 0 : index
    %c0_7 = arith.constant 0 : index
    %10 = vector.load %arg4[%c0_6, %c0_7] : memref<256x256xbf16, #tpu.memory_space<vmem>>, vector<256x256xbf16>
    %cst_8 = arith.constant dense<0.000000e+00> : vector<16x256xf32>
    %11 = tpu.matmul %9, %10, %cst_8 {dimension_numbers = #tpu.dot_dimension_numbers<[1], [0], [0], [1], [0, 0, 1, 1], [], []>} : vector<16x256xbf16>, vector<256x256xbf16>, vector<16x256xf32> -> vector<16x256xf32>
    %c0_9 = arith.constant 0 : index
    %c0_10 = arith.constant 0 : index
    %12 = vector.load %arg5[%c0_9, %c0_10] : memref<1x256xf32, #tpu.memory_space<vmem>>, vector<1x256xf32>
    %13 = vector.broadcast %12 : vector<1x256xf32> to vector<16x256xf32>
    %14 = arith.addf %11, %13 : vector<16x256xf32>
    %cst_11 = arith.constant 0.000000e+00 : f32
    %15 = vector.broadcast %cst_11 : f32 to vector<16x256xf32>
    %16 = arith.maximumf %14, %15 : vector<16x256xf32>
    %17 = arith.truncf %16 : vector<16x256xf32> to vector<16x256xbf16>
    %c0_12 = arith.constant 0 : index
    %c0_13 = arith.constant 0 : index
    %18 = vector.load %arg6[%c0_12, %c0_13] : memref<256x128xbf16, #tpu.memory_space<vmem>>, vector<256x128xbf16>
    %cst_14 = arith.constant dense<0.000000e+00> : vector<16x128xf32>
    %19 = tpu.matmul %17, %18, %cst_14 {dimension_numbers = #tpu.dot_dimension_numbers<[1], [0], [0], [1], [0, 0, 1, 1], [], []>} : vector<16x256xbf16>, vector<256x128xbf16>, vector<16x128xf32> -> vector<16x128xf32>
    %c0_15 = arith.constant 0 : index
    %c0_16 = arith.constant 0 : index
    %20 = vector.load %arg7[%c0_15, %c0_16] : memref<1x128xf32, #tpu.memory_space<vmem>>, vector<1x128xf32>
    %21 = vector.broadcast %20 : vector<1x128xf32> to vector<16x128xf32>
    %22 = arith.addf %19, %21 : vector<16x128xf32>
    %cst_17 = arith.constant dense<0xFF800000> : vector<16xf32>
    %23 = vector.multi_reduction <maximumf>, %22, %cst_17 [1] : vector<16x128xf32> to vector<16xf32>
    %24 = vector.shape_cast %23 : vector<16xf32> to vector<16x1xf32>
    %25 = vector.broadcast %24 : vector<16x1xf32> to vector<16x128xf32>
    %26 = arith.subf %22, %25 : vector<16x128xf32>
    %27 = math.exp %26 : vector<16x128xf32>
    %cst_18 = arith.constant dense<0.000000e+00> : vector<16xf32>
    %28 = vector.multi_reduction <add>, %27, %cst_18 [1] : vector<16x128xf32> to vector<16xf32>
    %29 = vector.shape_cast %28 : vector<16xf32> to vector<16x1xf32>
    %30 = math.log %29 : vector<16x1xf32>
    %31 = vector.broadcast %30 : vector<16x1xf32> to vector<16x128xf32>
    %32 = arith.subf %26, %31 : vector<16x128xf32>
    %33 = arith.truncf %32 : vector<16x128xf32> to vector<16x128xbf16>
    %c0_19 = arith.constant 0 : index
    %c0_20 = arith.constant 0 : index
    %34 = vector.load %arg8[%c0_19, %c0_20] : memref<16x128xbf16, #tpu.memory_space<vmem>>, vector<16x128xbf16>
    tpu.vector_store %arg8[%c0_19, %c0_20], %33 {strides = array<i32>} : memref<16x128xbf16, #tpu.memory_space<vmem>>, vector<16x128xbf16>,
    return
  }
  func.func @transform_0(%arg0: i32) -> (i32, i32) {
    %c0_i32 = arith.constant 0 : i32
    %c0_i32_0 = arith.constant 0 : i32
    return %arg0, %c0_i32 : i32, i32
  }
  func.func @transform_1(%arg0: i32) -> (i32, i32) {
    %c0_i32 = arith.constant 0 : i32
    %c0_i32_0 = arith.constant 0 : i32
    %c0_i32_1 = arith.constant 0 : i32
    return %c0_i32, %c0_i32_0 : i32, i32
  }
  func.func @transform_2(%arg0: i32) -> (i32, i32) {
    %c0_i32 = arith.constant 0 : i32
    %c0_i32_0 = arith.constant 0 : i32
    %c0_i32_1 = arith.constant 0 : i32
    return %c0_i32, %c0_i32_0 : i32, i32
  }
  func.func @transform_3(%arg0: i32) -> (i32, i32) {
    %c0_i32 = arith.constant 0 : i32
    %c0_i32_0 = arith.constant 0 : i32
    %c0_i32_1 = arith.constant 0 : i32
    return %c0_i32, %c0_i32_0 : i32, i32
  }
  func.func @transform_4(%arg0: i32) -> (i32, i32) {
    %c0_i32 = arith.constant 0 : i32
    %c0_i32_0 = arith.constant 0 : i32
    %c0_i32_1 = arith.constant 0 : i32
    return %c0_i32, %c0_i32_0 : i32, i32
  }
  func.func @transform_5(%arg0: i32) -> (i32, i32) {
    %c0_i32 = arith.constant 0 : i32
    %c0_i32_0 = arith.constant 0 : i32
    %c0_i32_1 = arith.constant 0 : i32
    return %c0_i32, %c0_i32_0 : i32, i32
  }
  func.func @transform_6(%arg0: i32) -> (i32, i32) {
    %c0_i32 = arith.constant 0 : i32
    %c0_i32_0 = arith.constant 0 : i32
    %c0_i32_1 = arith.constant 0 : i32
    return %c0_i32, %c0_i32_0 : i32, i32
  }
  func.func @transform_7(%arg0: i32) -> (i32, i32) {
    %c0_i32 = arith.constant 0 : i32
    %c0_i32_0 = arith.constant 0 : i32
    return %arg0, %c0_i32 : i32, i32
  }
}

</mosaic_0001>

<llo_original>
// kernel: tpu_custom_call.1
$region0: #{tpu_custom_call.1}
  #allocation0 [shape = 'u32[]', space=smem, size = 0x4, offset = 0x4, fixed_abs, tag = 'smem constant byte address 0x4 - core index']
  #allocation1 [shape = 'u32[144,128]{1,0:T(1,128)}', space=vmem, size = 0x12000, scoped, tag = 'internal scratch']
  %s0 = inlined_call_operand.hbm [shape: f32[24,192], index: 0, kind: input, shape index: {}]
  %s1 = inlined_call_operand.hbm [shape: bf16[192,256], index: 1, kind: input, shape index: {}]
  %s2 = inlined_call_operand.vmem [shape: f32[1,256], index: 2, kind: input, shape index: {}]
  %s3 = inlined_call_operand.hbm [shape: bf16[256,256], index: 3, kind: input, shape index: {}]
  %s4 = inlined_call_operand.vmem [shape: f32[1,256], index: 4, kind: input, shape index: {}]
  %s5 = inlined_call_operand.hbm [shape: bf16[256,128], index: 5, kind: input, shape index: {}]
  %s6 = inlined_call_operand.vmem [shape: f32[1,128], index: 6, kind: input, shape index: {}]
  %s7 = inlined_call_operand.hbm [shape: bf16[24,128], index: 7, kind: output, shape index: {}]
  %s8 = sld [smem:[#allocation0]]
  $region77: #{tpu_custom_call.1} parent=0
    _
  %s10 = ssub.s32 1, %s8
  %s11 = scalar_select 0, %s10, %s8
  $region1: #{tpu_custom_call.1} parent=0
    #allocation2 [shape = 'u8[32768]{0}', space=vmem, size = 0x8000, scoped, tag = 'input window, operand 0']
    #allocation3 [shape = 's32[2]{0}', space=sflag, size = 0x8, scoped, tag = 'scoped memory for tpu_custom_call.1']
    #allocation4 [shape = 's32[2]{0}', space=sflag, size = 0x8, scoped, tag = 'scoped memory for tpu_custom_call.1']
    #allocation5 [shape = 'u8[98304]{0}', space=vmem, size = 0x18000, scoped, tag = 'input window, operand 1, single buffered']
    #allocation6 [shape = 's32[1]{0}', space=sflag, size = 0x4, scoped, tag = 'scoped memory for tpu_custom_call.1']
    #allocation7 [shape = 'u8[131072]{0}', space=vmem, size = 0x20000, scoped, tag = 'input window, operand 3, single buffered']
    #allocation8 [shape = 'u8[65536]{0}', space=vmem, size = 0x10000, scoped, tag = 'input window, operand 5, single buffered']
    #allocation9 [shape = 's32[1]{0}', space=sflag, size = 0x4, scoped, tag = 'scoped memory for tpu_custom_call.1']
    #allocation10 [shape = 'u8[8192]{0}', space=vmem, size = 0x2000, scoped, tag = 'output window, operand 0']
    %12 = vsyncpa [#allocation3], 0
    %s13 = scalar_lea.sflag [#allocation3], 1
    %14 = vsyncpa %s13, 0
    %15 = vsyncpa [#allocation6], 0
    %16 = vsyncpa [#allocation9], 0
    %17 = vsyncpa [#allocation4], 0
    %s18 = scalar_lea.sflag [#allocation4], 1
    %19 = vsyncpa %s18, 0
    loop: start=0, step=1, limit=4
    $region2: #{tpu_custom_call.1} parent=1 // loop_pre_header
      _
    $region3: #{tpu_custom_call.1} parent=1 // loop_header
      %s21 = sphi 0, %s25
      %p22 = scmp.ge.s32.totalorder %s21, 4
      %s31 = sphi 0, %s33
      %s34 = sphi 0, %s31
      %s35 = sphi 0, %s34
      %s51 = sphi 0, %s35
      %s55 = sphi 0, %s55
      %s57 = sphi 0, %s55
      %s58 = sphi 0, %s57
      %s72 = sphi 0, %s58
      %s76 = sphi 0, %s76
      %s78 = sphi 0, %s76
      %s79 = sphi 0, %s78
      %s93 = sphi 0, %s79
      %s97 = sphi 0, %s97
      %s99 = sphi 0, %s97
      %s100 = sphi 0, %s99
      %s114 = sphi 0, %s100
      %s118 = sphi 0, %s118
      %s120 = sphi 0, %s118
      %s121 = sphi 0, %s120
      %s135 = sphi 0, %s121
      %s139 = sphi 0, %s139
      %s141 = sphi 0, %s139
      %s142 = sphi 0, %s141
      %s156 = sphi 0, %s142
      %s160 = sphi 0, %s160
      %s162 = sphi 0, %s160
      %s163 = sphi 0, %s162
      %s177 = sphi 0, %s163
      %s183 = sphi 0, %s185
      %s186 = sphi 0, %s183
      %s187 = sphi 0, %s186
      %s203 = sphi 0, %s187
    $region4: #{tpu_custom_call.1} parent=1 // loop_header_branch
      %24 = sbr.rel (%p22) target = $region8
    $region5: #{tpu_custom_call.1} parent=1 // loop_body
      %s26 = ssub.s32 %s21, 1
      %s27 = ssub.s32 %s21, 2
      %s28 = sadd.s32 %s21, 1
      %s29 = ssub.s32 %s21, %s28
      %p30 = scmp.eq.s32.totalorder %s29, 0
      %s32 = sadd.s32 %s31, 1
      %s33 = scalar_select %p30, %s31, %s32
      %p36 = pneg %p30
      %p37 = scmp.eq.s32.totalorder %s21, 1
      %p38 = por %p36, %p37
      %p39 = scmp.ne.s32.totalorder %s31, %s34
      %p40 = scmp.eq.s32.totalorder %s21, 0
      %p41 = por %p39, %p40
      %p42 = scmp.ne.s32.totalorder %s31, %s34
      %p43 = scmp.eq.s32.totalorder %s26, 1
      %p44 = por %p42, %p43
      %p45 = scmp.ne.s32.totalorder %s34, %s35
      %p46 = scmp.eq.s32.totalorder %s26, 0
      %p47 = por %p45, %p46
      %p48 = scmp.ne.s32.totalorder %s34, %s35
      %p49 = scmp.eq.s32.totalorder %s27, 1
      %p50 = por %p48, %p49
      %p52 = scmp.ne.s32.totalorder %s35, %s51
      %p53 = scmp.eq.s32.totalorder %s27, 0
      %p54 = por %p52, %p53
      %s56 = sadd.s32 %s55, 1
      %p59 = scmp.eq.s32.totalorder %s21, 1
      %p60 = scmp.ne.s32.totalorder %s55, %s57
      %p61 = scmp.eq.s32.totalorder %s21, 0
      %p62 = por %p60, %p61
      %p63 = scmp.ne.s32.totalorder %s55, %s57
      %p64 = scmp.eq.s32.totalorder %s26, 1
      %p65 = por %p63, %p64
      %p66 = scmp.ne.s32.totalorder %s57, %s58
      %p67 = scmp.eq.s32.totalorder %s26, 0
      %p68 = por %p66, %p67
      %p69 = scmp.ne.s32.totalorder %s57, %s58
      %p70 = scmp.eq.s32.totalorder %s27, 1
      %p71 = por %p69, %p70
      %p73 = scmp.ne.s32.totalorder %s58, %s72
      %p74 = scmp.eq.s32.totalorder %s27, 0
      %p75 = por %p73, %p74
      %s77 = sadd.s32 %s76, 1
      %p80 = scmp.eq.s32.totalorder %s21, 1
      %p81 = scmp.ne.s32.totalorder %s76, %s78
      %p82 = scmp.eq.s32.totalorder %s21, 0
      %p83 = por %p81, %p82
      %p84 = scmp.ne.s32.totalorder %s76, %s78
      %p85 = scmp.eq.s32.totalorder %s26, 1
      %p86 = por %p84, %p85
      %p87 = scmp.ne.s32.totalorder %s78, %s79
      %p88 = scmp.eq.s32.totalorder %s26, 0
      %p89 = por %p87, %p88
      %p90 = scmp.ne.s32.totalorder %s78, %s79
      %p91 = scmp.eq.s32.totalorder %s27, 1
      %p92 = por %p90, %p91
      %p94 = scmp.ne.s32.totalorder %s79, %s93
      %p95 = scmp.eq.s32.totalorder %s27, 0
      %p96 = por %p94, %p95
      %s98 = sadd.s32 %s97, 1
      %p101 = scmp.eq.s32.totalorder %s21, 1
      %p102 = scmp.ne.s32.totalorder %s97, %s99
      %p103 = scmp.eq.s32.totalorder %s21, 0
      %p104 = por %p102, %p103
      %p105 = scmp.ne.s32.totalorder %s97, %s99
      %p106 = scmp.eq.s32.totalorder %s26, 1
      %p107 = por %p105, %p106
      %p108 = scmp.ne.s32.totalorder %s99, %s100
      %p109 = scmp.eq.s32.totalorder %s26, 0
      %p110 = por %p108, %p109
      %p111 = scmp.ne.s32.totalorder %s99, %s100
      %p112 = scmp.eq.s32.totalorder %s27, 1
      %p113 = por %p111, %p112
      %p115 = scmp.ne.s32.totalorder %s100, %s114
      %p116 = scmp.eq.s32.totalorder %s27, 0
      %p117 = por %p115, %p116
      %s119 = sadd.s32 %s118, 1
      %p122 = scmp.eq.s32.totalorder %s21, 1
      %p123 = scmp.ne.s32.totalorder %s118, %s120
      %p124 = scmp.eq.s32.totalorder %s21, 0
      %p125 = por %p123, %p124
      %p126 = scmp.ne.s32.totalorder %s118, %s120
      %p127 = scmp.eq.s32.totalorder %s26, 1
      %p128 = por %p126, %p127
      %p129 = scmp.ne.s32.totalorder %s120, %s121
      %p130 = scmp.eq.s32.totalorder %s26, 0
      %p131 = por %p129, %p130
      %p132 = scmp.ne.s32.totalorder %s120, %s121
      %p133 = scmp.eq.s32.totalorder %s27, 1
      %p134 = por %p132, %p133
      %p136 = scmp.ne.s32.totalorder %s121, %s135
      %p137 = scmp.eq.s32.totalorder %s27, 0
      %p138 = por %p136, %p137
      %s140 = sadd.s32 %s139, 1
      %p143 = scmp.eq.s32.totalorder %s21, 1
      %p144 = scmp.ne.s32.totalorder %s139, %s141
      %p145 = scmp.eq.s32.totalorder %s21, 0
      %p146 = por %p144, %p145
      %p147 = scmp.ne.s32.totalorder %s139, %s141
      %p148 = scmp.eq.s32.totalorder %s26, 1
      %p149 = por %p147, %p148
      %p150 = scmp.ne.s32.totalorder %s141, %s142
      %p151 = scmp.eq.s32.totalorder %s26, 0
      %p152 = por %p150, %p151
      %p153 = scmp.ne.s32.totalorder %s141, %s142
      %p154 = scmp.eq.s32.totalorder %s27, 1
      %p155 = por %p153, %p154
      %p157 = scmp.ne.s32.totalorder %s142, %s156
      %p158 = scmp.eq.s32.totalorder %s27, 0
      %p159 = por %p157, %p158
      %s161 = sadd.s32 %s160, 1
      %p164 = scmp.eq.s32.totalorder %s21, 1
      %p165 = scmp.ne.s32.totalorder %s160, %s162
      %p166 = scmp.eq.s32.totalorder %s21, 0
      %p167 = por %p165, %p166
      %p168 = scmp.ne.s32.totalorder %s160, %s162
      %p169 = scmp.eq.s32.totalorder %s26, 1
      %p170 = por %p168, %p169
      %p171 = scmp.ne.s32.totalorder %s162, %s163
      %p172 = scmp.eq.s32.totalorder %s26, 0
      %p173 = por %p171, %p172
      %p174 = scmp.ne.s32.totalorder %s162, %s163
      %p175 = scmp.eq.s32.totalorder %s27, 1
      %p176 = por %p174, %p175
      %p178 = scmp.ne.s32.totalorder %s163, %s177
      %p179 = scmp.eq.s32.totalorder %s27, 0
      %p180 = por %p178, %p179
      %s181 = ssub.s32 %s21, %s28
      %p182 = scmp.eq.s32.totalorder %s181, 0
      %s184 = sadd.s32 %s183, 1
      %s185 = scalar_select %p182, %s183, %s184
      %p188 = pneg %p182
      %p189 = scmp.eq.s32.totalorder %s21, 1
      %p190 = por %p188, %p189
      %p191 = scmp.ne.s32.totalorder %s183, %s186
      %p192 = scmp.eq.s32.totalorder %s21, 0
      %p193 = por %p191, %p192
      %p194 = scmp.ne.s32.totalorder %s183, %s186
      %p195 = scmp.eq.s32.totalorder %s26, 1
      %p196 = por %p194, %p195
      %p197 = scmp.ne.s32.totalorder %s186, %s187
      %p198 = scmp.eq.s32.totalorder %s26, 0
      %p199 = por %p197, %p198
      %p200 = scmp.ne.s32.totalorder %s186, %s187
      %p201 = scmp.eq.s32.totalorder %s27, 1
      %p202 = por %p200, %p201
      %p204 = scmp.ne.s32.totalorder %s187, %s203
      %p205 = scmp.eq.s32.totalorder %s27, 0
      %p206 = por %p204, %p205
      %p207 = scmp.le.s32.totalorder 1, %s21
      %p208 = scmp.lt.s32.totalorder %s21, 3
      %p209 = pnand %p207, %p208
      %p210 = pneg %p209
      // Predicated region
      $region9: #{tpu_custom_call.1} parent=5 // pred_check
        _
      $region10: #{tpu_custom_call.1} parent=5 // pred_check_branch
        %212 = sbr.rel (%p209) target = $region12
      $region11: #{tpu_custom_call.1} parent=5 // pred_region
        %s213 = ssub.s32 %s21, 1
        // Predicated region
        $region13: #{tpu_custom_call.1} parent=11 // pred_check
          %p214 = pneg %p68
        $region14: #{tpu_custom_call.1} parent=11 // pred_check_branch
          %216 = sbr.rel (%p214) target = $region16
        $region15: #{tpu_custom_call.1} parent=11 // pred_region
          %s218 = ssub.s32 3072, 3072
          %219 = vsyncadd [#allocation6], %s218
          %s220 = sshll.u32 [#allocation5], 4
          %s221 = int_to_ptr.vmem [resolvable:$true] %s220
          %226 = dma.hbm_to_vmem [thread:$0]  %s1, 3072, %s221, [#allocation6], 128, 128, 8
        $region16: #{tpu_custom_call.1} parent=11 // pred_fallthru
          _
        // Predicated region
        $region17: #{tpu_custom_call.1} parent=11 // pred_check
          %p227 = pneg %p89
        $region18: #{tpu_custom_call.1} parent=11 // pred_check_branch
          %229 = sbr.rel (%p227) target = $region20
        $region19: #{tpu_custom_call.1} parent=11 // pred_region
          _
        $region20: #{tpu_custom_call.1} parent=11 // pred_fallthru
          _
        // Predicated region
        $region21: #{tpu_custom_call.1} parent=11 // pred_check
          %p230 = pneg %p110
        $region22: #{tpu_custom_call.1} parent=11 // pred_check_branch
          %232 = sbr.rel (%p230) target = $region24
        $region23: #{tpu_custom_call.1} parent=11 // pred_region
          %s234 = ssub.s32 4096, 4096
          %235 = vsyncadd [#allocation6], %s234
          %s236 = sshll.u32 [#allocation7], 4
          %s237 = int_to_ptr.vmem [resolvable:$true] %s236
          %242 = dma.hbm_to_vmem [thread:$0]  %s3, 4096, %s237, [#allocation6], 128, 128, 8
        $region24: #{tpu_custom_call.1} parent=11 // pred_fallthru
          _
        // Predicated region
        $region25: #{tpu_custom_call.1} parent=11 // pred_check
          %p243 = pneg %p131
        $region26: #{tpu_custom_call.1} parent=11 // pred_check_branch
          %245 = sbr.rel (%p243) target = $region28
        $region27: #{tpu_custom_call.1} parent=11 // pred_region
          _
        $region28: #{tpu_custom_call.1} parent=11 // pred_fallthru
          _
        // Predicated region
        $region29: #{tpu_custom_call.1} parent=11 // pred_check
          %p246 = pneg %p152
        $region30: #{tpu_custom_call.1} parent=11 // pred_check_branch
          %248 = sbr.rel (%p246) target = $region32
        $region31: #{tpu_custom_call.1} parent=11 // pred_region
          %s250 = ssub.s32 2048, 2048
          %251 = vsyncadd [#allocation9], %s250
          %s252 = sshll.u32 [#allocation8], 4
          %s253 = int_to_ptr.vmem [resolvable:$true] %s252
          %258 = dma.hbm_to_vmem [thread:$0]  %s5, 2048, %s253, [#allocation9], 64, 64, 4
        $region32: #{tpu_custom_call.1} parent=11 // pred_fallthru
          _
        // Predicated region
        $region33: #{tpu_custom_call.1} parent=11 // pred_check
          %p259 = pneg %p173
        $region34: #{tpu_custom_call.1} parent=11 // pred_check_branch
          %261 = sbr.rel (%p259) target = $region36
        $region35: #{tpu_custom_call.1} parent=11 // pred_region
          _
        $region36: #{tpu_custom_call.1} parent=11 // pred_fallthru
          _
      $region12: #{tpu_custom_call.1} parent=5 // pred_fallthru
        _
      %p262 = scmp.lt.s32.totalorder %s21, 2
      // Predicated region
      $region37: #{tpu_custom_call.1} parent=5 // pred_check
        %p263 = pneg %p262
      $region38: #{tpu_custom_call.1} parent=5 // pred_check_branch
        %265 = sbr.rel (%p263) target = $region40
      $region39: #{tpu_custom_call.1} parent=5 // pred_region
        // Predicated region
        $region41: #{tpu_custom_call.1} parent=39 // pred_check
          %p266 = pneg %p41
        $region42: #{tpu_custom_call.1} parent=39 // pred_check_branch
          %268 = sbr.rel (%p266) target = $region44
        $region43: #{tpu_custom_call.1} parent=39 // pred_region
          %s269 = sand.u32 %s31, 1
          %s270 = scalar_lea.sflag [#allocation3], %s269
          %s271 = sand.u32 %s31, 1
          %s272 = smul.addr %s271, 32
          %s273 = scalar_lea.vmem [#allocation2], %s272
          %s274 = smul.u32 2, %s21
          %s275 = ssub.s32 3, %s274
          %p276 = scmp.lt.s32.totalorder %s275, 2
          %s277 = scalar_select %p276, %s275, 2
          %s278 = smul.u32 128, %s277
          %s279 = smul.u32 %s278, 2
          %s281 = ssub.s32 512, %s279
          %282 = vsyncadd %s270, %s281
          %p283 = scmp.ne.s32.totalorder 0, %s279
          %s284 = smul.addr %s274, 2
          %s285 = smul.addr %s284, 128
          %s286 = scalar_lea.hbm %s0, %s285
          %s287 = smul.u32 16, %s277
          %s288 = sshll.u32 %s273, 4
          %s289 = int_to_ptr.vmem [resolvable:$true] %s288
          %s290 = sshll.u32 %s287, 4
          %294 = dma.hbm_to_vmem [thread:$0]  (%p283), %s286, %s290, %s289, %s270, 256, 256, 16
        $region44: #{tpu_custom_call.1} parent=39 // pred_fallthru
          _
      $region40: #{tpu_custom_call.1} parent=5 // pred_fallthru
        _
      %p295 = scmp.le.s32.totalorder 1, %s21
      %p296 = scmp.lt.s32.totalorder %s21, 3
      %p297 = pnand %p295, %p296
      %p298 = pneg %p297
      // Predicated region
      $region45: #{tpu_custom_call.1} parent=5 // pred_check
        _
      $region46: #{tpu_custom_call.1} parent=5 // pred_check_branch
        %300 = sbr.rel (%p297) target = $region48
      $region47: #{tpu_custom_call.1} parent=5 // pred_region
        %s301 = ssub.s32 %s21, 1
        %s302 = sand.u32 %s34, 1
        %s303 = scalar_lea.sflag [#allocation3], %s302
        %s304 = sand.u32 %s34, 1
        %s305 = smul.addr %s304, 32
        %s306 = scalar_lea.vmem [#allocation2], %s305
        // Predicated region
        $region49: #{tpu_custom_call.1} parent=47 // pred_check
          %p307 = pneg %p47
        $region50: #{tpu_custom_call.1} parent=47 // pred_check_branch
          %309 = sbr.rel (%p307) target = $region52
        $region51: #{tpu_custom_call.1} parent=47 // pred_region
          %310 = dma.done %s303, 512
        $region52: #{tpu_custom_call.1} parent=47 // pred_fallthru
          _
        // Predicated region
        $region53: #{tpu_custom_call.1} parent=47 // pred_check
          %p311 = pneg %p68
        $region54: #{tpu_custom_call.1} parent=47 // pred_check_branch
          %313 = sbr.rel (%p311) target = $region56
        $region55: #{tpu_custom_call.1} parent=47 // pred_region
          %314 = dma.done [#allocation6], 3072
        $region56: #{tpu_custom_call.1} parent=47 // pred_fallthru
          _
        // Predicated region
        $region57: #{tpu_custom_call.1} parent=47 // pred_check
          %p315 = pneg %p110
        $region58: #{tpu_custom_call.1} parent=47 // pred_check_branch
          %317 = sbr.rel (%p315) target = $region60
        $region59: #{tpu_custom_call.1} parent=47 // pred_region
          %318 = dma.done [#allocation6], 4096
        $region60: #{tpu_custom_call.1} parent=47 // pred_fallthru
          _
        // Predicated region
        $region61: #{tpu_custom_call.1} parent=47 // pred_check
          %p319 = pneg %p152
        $region62: #{tpu_custom_call.1} parent=47 // pred_check_branch
          %321 = sbr.rel (%p319) target = $region64
        $region63: #{tpu_custom_call.1} parent=47 // pred_region
          %322 = dma.done [#allocation9], 2048
        $region64: #{tpu_custom_call.1} parent=47 // pred_fallthru
          _
        %s323 = sand.u32 %s34, 1
        %s324 = scalar_lea.sflag [#allocation3], %s323
        %s325 = sand.u32 %s34, 1
        %s326 = smul.addr %s325, 32
        %s327 = scalar_lea.vmem [#allocation2], %s326
        %p328 = pneg %p47
        %p329 = pneg %p44
        %p330 = pneg %p68
        %p331 = pneg %p65
        %p332 = pneg %p89
        %p333 = pneg %p86
        %p334 = pneg %p110
        %p335 = pneg %p107
        %p336 = pneg %p131
        %p337 = pneg %p128
        %p338 = pneg %p152
        %p339 = pneg %p149
        %p340 = pneg %p173
        %p341 = pneg %p170
        %p342 = pneg %p199
        %p343 = pneg %p196
        %s344 = sand.u32 %s186, 1
        %s345 = scalar_lea.sflag [#allocation4], %s344
        %s346 = sand.u32 %s186, 1
        %s347 = smul.addr %s346, 8
        %s348 = scalar_lea.vmem [#allocation10], %s347
        %s349 = smul.u32 2, %s26
        %s350 = ssub.s32 3, %s349
        %p351 = scmp.lt.s32.totalorder %s350, 2
        %s352 = scalar_select %p351, %s350, 2
        %s353 = smul.u32 128, %s352
        %s354 = smul.u32 %s353, 2
        %s355 = smul.u32 2, %s26
        %s356 = ssub.s32 3, %s355
        %p357 = scmp.lt.s32.totalorder %s356, 2
        %s358 = scalar_select %p357, %s356, 2
        %s359 = smul.u32 64, %s358
        %v361 = vld [vmem:[%s306] sm:$0xff]
        %v362 = vld [vmem:[%s306 + $0x8] sm:$0xff]
        %v363 = vld [vmem:[%s306 + $0x10] sm:$0xff]
        %v364 = vld [vmem:[%s306 + $0x18] sm:$0xff]
        %v365 = vpack.c.bf16 %v363, %v361
        %v366 = vpack.c.bf16 %v364, %v362
        %v367 = vld [vmem:[#allocation5] sm:$0xff]
        %v368 = vld [vmem:[#allocation5 + $0x8] sm:$0xff]
        %v369 = vld [vmem:[#allocation5 + $0x10] sm:$0xff]
        %v370 = vld [vmem:[#allocation5 + $0x18] sm:$0xff]
        %v371 = vld [vmem:[#allocation5 + $0x20] sm:$0xff]
        %v372 = vld [vmem:[#allocation5 + $0x28] sm:$0xff]
        %v373 = vld [vmem:[#allocation5 + $0x30] sm:$0xff]
        %v374 = vld [vmem:[#allocation5 + $0x38] sm:$0xff]
        %v375 = vld [vmem:[#allocation5 + $0x40] sm:$0xff]
        %v376 = vld [vmem:[#allocation5 + $0x48] sm:$0xff]
        %v377 = vld [vmem:[#allocation5 + $0x50] sm:$0xff]
        %v378 = vld [vmem:[#allocation5 + $0x58] sm:$0xff]
        %v379 = vld [vmem:[#allocation5 + $0x60] sm:$0xff]
        %v380 = vld [vmem:[#allocation5 + $0x68] sm:$0xff]
        %v381 = vld [vmem:[#allocation5 + $0x70] sm:$0xff]
        %v382 = vld [vmem:[#allocation5 + $0x78] sm:$0xff]
        %v383 = vld [vmem:[#allocation5 + $0x80] sm:$0xff]
        %v384 = vld [vmem:[#allocation5 + $0x88] sm:$0xff]
        %v385 = vld [vmem:[#allocation5 + $0x90] sm:$0xff]
        %v386 = vld [vmem:[#allocation5 + $0x98] sm:$0xff]
        %v387 = vld [vmem:[#allocation5 + $0xa0] sm:$0xff]
        %v388 = vld [vmem:[#allocation5 + $0xa8] sm:$0xff]
        %v389 = vld [vmem:[#allocation5 + $0xb0] sm:$0xff]
        %v390 = vld [vmem:[#allocation5 + $0xb8] sm:$0xff]
        %v391 = vld [vmem:[%s2] sm:$0x3]
        %v393 = vlaneseq
        %v394 = vshrl.u32 %v393, 7
        %v395 = vsub.s32 0, %v394
        %v396 = vrot.slane %v391, %v395
        %v397 = vlaneseq
        %v398 = vshrl.u32 %v397, 7
        %v399 = vsub.s32 1, %v398
        %v400 = vrot.slane %v391, %v399
        %v427 = vunpack.c.l.b16 %v367
        %v428 = vunpack.c.h.b16 %v367
        %v429 = vunpack.c.l.b16 %v368
        %v430 = vunpack.c.h.b16 %v368
        %v431 = vunpack.c.l.b16 %v369
        %v432 = vunpack.c.h.b16 %v369
        %v433 = vunpack.c.l.b16 %v370
        %v434 = vunpack.c.h.b16 %v370
        %v435 = vunpack.c.l.b16 %v371
        %v436 = vunpack.c.h.b16 %v371
        %v437 = vunpack.c.l.b16 %v372
        %v438 = vunpack.c.h.b16 %v372
        %v439 = vunpack.c.l.b16 %v373
        %v440 = vunpack.c.h.b16 %v373
        %v441 = vunpack.c.l.b16 %v374
        %v442 = vunpack.c.h.b16 %v374
        %v443 = vunpack.c.l.b16 %v375
        %v444 = vunpack.c.h.b16 %v375
        %v445 = vunpack.c.l.b16 %v376
        %v446 = vunpack.c.h.b16 %v376
        %v447 = vunpack.c.l.b16 %v377
        %v448 = vunpack.c.h.b16 %v377
        %v449 = vunpack.c.l.b16 %v378
        %v450 = vunpack.c.h.b16 %v378
        %v451 = vunpack.c.l.b16 %v379
        %v452 = vunpack.c.h.b16 %v379
        %v453 = vunpack.c.l.b16 %v380
        %v454 = vunpack.c.h.b16 %v380
        %v455 = vunpack.c.l.b16 %v381
        %v456 = vunpack.c.h.b16 %v381
        %v457 = vunpack.c.l.b16 %v382
        %v458 = vunpack.c.h.b16 %v382
        %v459 = vunpack.c.l.b16 %v383
        %v460 = vunpack.c.h.b16 %v383
        %v461 = vunpack.c.l.b16 %v384
        %v462 = vunpack.c.h.b16 %v384
        %v463 = vunpack.c.l.b16 %v385
        %v464 = vunpack.c.h.b16 %v385
        %v465 = vunpack.c.l.b16 %v386
        %v466 = vunpack.c.h.b16 %v386
        %v467 = vunpack.c.l.b16 %v387
        %v468 = vunpack.c.h.b16 %v387
        %v469 = vunpack.c.l.b16 %v388
        %v470 = vunpack.c.h.b16 %v388
        %v471 = vunpack.c.l.b16 %v389
        %v472 = vunpack.c.h.b16 %v389
        %v473 = vunpack.c.l.b16 %v390
        %v474 = vunpack.c.h.b16 %v390
        %v475 = vpack.c.b16 %v429, %v427
        %v476 = vpack.c.b16 %v430, %v428
        %v477 = vpack.c.b16 %v433, %v431
        %v478 = vpack.c.b16 %v434, %v432
        %v479 = vpack.c.b16 %v437, %v435
        %v480 = vpack.c.b16 %v438, %v436
        %v481 = vpack.c.b16 %v441, %v439
        %v482 = vpack.c.b16 %v442, %v440
        %v483 = vpack.c.b16 %v445, %v443
        %v484 = vpack.c.b16 %v446, %v444
        %v485 = vpack.c.b16 %v449, %v447
        %v486 = vpack.c.b16 %v450, %v448
        %v487 = vpack.c.b16 %v453, %v451
        %v488 = vpack.c.b16 %v454, %v452
        %v489 = vpack.c.b16 %v457, %v455
        %v490 = vpack.c.b16 %v458, %v456
        %v491 = vpack.c.b16 %v461, %v459
        %v492 = vpack.c.b16 %v462, %v460
        %v493 = vpack.c.b16 %v465, %v463
        %v494 = vpack.c.b16 %v466, %v464
        %v495 = vpack.c.b16 %v469, %v467
        %v496 = vpack.c.b16 %v470, %v468
        %v497 = vpack.c.b16 %v473, %v471
        %v498 = vpack.c.b16 %v474, %v472
        %vm523 = vcmask 523264
        %v525 = vsel %vm523, %v366, 0
        %527 = vmatprep.subr.bf16.mxu0 %v476
        %528 = vmatpush1.bf16.msra.mxu0 %v475
        %529 = vmatprep.subr.bf16.mxu0 %v478
        %530 = vmatpush1.bf16.msra.mxu0 %v477
        %531 = vmatprep.subr.bf16.mxu0 %v480
        %532 = vmatpush1.bf16.msra.mxu0 %v479
        %533 = vmatprep.subr.bf16.mxu0 %v482
        %534 = vmatpush1.bf16.msra.mxu0 %v481
        %535 = vmatprep.subr.bf16.mxu0 %v484
        %536 = vmatpush1.bf16.msra.mxu0 %v483
        %537 = vmatprep.subr.bf16.mxu0 %v486
        %538 = vmatpush1.bf16.msra.mxu0 %v485
        %539 = vmatprep.subr.bf16.mxu0 %v488
        %540 = vmatpush1.bf16.msra.mxu0 %v487
        %541 = vmatprep.subr.bf16.mxu0 %v490
        %542 = vmatpush1.bf16.msra.mxu0 %v489
        %543 = vmatprep.subr.bf16.mxu0 %v492
        %544 = vmatpush1.bf16.msra.mxu0 %v491
        %545 = vmatprep.subr.bf16.mxu0 %v494
        %546 = vmatpush1.bf16.msra.mxu0 %v493
        %547 = vmatprep.subr.bf16.mxu0 %v496
        %548 = vmatpush1.bf16.msra.mxu0 %v495
        %549 = vmatprep.subr.bf16.mxu0 %v498
        %550 = vmatpush1.bf16.msra.mxu0 %v497
        %551 = vmatprep.subr.bf16.mxu0 0
        %552 = vmatpush1.bf16.msra.mxu0 0
        %553 = vmatprep.subr.bf16.mxu0 0
        %554 = vmatpush1.bf16.msra.mxu0 0
        %555 = vmatprep.subr.bf16.mxu0 0
        %556 = vmatpush1.bf16.msra.mxu0 0
        %557 = vmatprep.subr.bf16.mxu0 0
        %558 = vmatpush1.bf16.msra.mxu0 0
        %559 = vmatprep.mubr.bf16.mxu0 %v525
        %560 = vmatmul.mubr.bf16.gmra.mrb[0].mxu0 %v365
        %v561 = vpop.f32.mrb[0].mxu0
        %v562 = vadd.f32 %v396, %v561
        %v563 = vpop.f32.mrb[0].mxu0
        %v564 = vadd.f32 %v400, %v563
        %v565 = vpop.f32.mrb[0].mxu0
        %v566 = vadd.f32 %v396, %v565
        %v567 = vpop.f32.mrb[0].mxu0
        %v568 = vadd.f32 %v400, %v567
        %569 = vdwg.mxu0
        %v570 = vmax.f32 %v562, 0.0
        %v571 = vmax.f32 %v564, 0.0
        %v572 = vmax.f32 %v566, 0.0
        %v573 = vmax.f32 %v568, 0.0
        %v574 = vpack.c.bf16 %v572, %v570
        %v575 = vpack.c.bf16 %v573, %v571
        %v576 = vld [vmem:[#allocation7] sm:$0xff]
        %v577 = vld [vmem:[#allocation7 + $0x8] sm:$0xff]
        %v578 = vld [vmem:[#allocation7 + $0x10] sm:$0xff]
        %v579 = vld [vmem:[#allocation7 + $0x18] sm:$0xff]
        %v580 = vld [vmem:[#allocation7 + $0x20] sm:$0xff]
        %v581 = vld [vmem:[#allocation7 + $0x28] sm:$0xff]
        %v582 = vld [vmem:[#allocation7 + $0x30] sm:$0xff]
        %v583 = vld [vmem:[#allocation7 + $0x38] sm:$0xff]
        %v584 = vld [vmem:[#allocation7 + $0x40] sm:$0xff]
        %v585 = vld [vmem:[#allocation7 + $0x48] sm:$0xff]
        %v586 = vld [vmem:[#allocation7 + $0x50] sm:$0xff]
        %v587 = vld [vmem:[#allocation7 + $0x58] sm:$0xff]
        %v588 = vld [vmem:[#allocation7 + $0x60] sm:$0xff]
        %v589 = vld [vmem:[#allocation7 + $0x68] sm:$0xff]
        %v590 = vld [vmem:[#allocation7 + $0x70] sm:$0xff]
        %v591 = vld [vmem:[#allocation7 + $0x78] sm:$0xff]
        %v592 = vld [vmem:[#allocation7 + $0x80] sm:$0xff]
        %v593 = vld [vmem:[#allocation7 + $0x88] sm:$0xff]
        %v594 = vld [vmem:[#allocation7 + $0x90] sm:$0xff]
        %v595 = vld [vmem:[#allocation7 + $0x98] sm:$0xff]
        %v596 = vld [vmem:[#allocation7 + $0xa0] sm:$0xff]
        %v597 = vld [vmem:[#allocation7 + $0xa8] sm:$0xff]
        %v598 = vld [vmem:[#allocation7 + $0xb0] sm:$0xff]
        %v599 = vld [vmem:[#allocation7 + $0xb8] sm:$0xff]
        %v600 = vld [vmem:[#allocation7 + $0xc0] sm:$0xff]
        %v601 = vld [vmem:[#allocation7 + $0xc8] sm:$0xff]
        %v602 = vld [vmem:[#allocation7 + $0xd0] sm:$0xff]
        %v603 = vld [vmem:[#allocation7 + $0xd8] sm:$0xff]
        %v604 = vld [vmem:[#allocation7 + $0xe0] sm:$0xff]
        %v605 = vld [vmem:[#allocation7 + $0xe8] sm:$0xff]
        %v606 = vld [vmem:[#allocation7 + $0xf0] sm:$0xff]
        %v607 = vld [vmem:[#allocation7 + $0xf8] sm:$0xff]
        %v608 = vld [vmem:[%s4] sm:$0x3]
        %v610 = vlaneseq
        %v611 = vshrl.u32 %v610, 7
        %v612 = vsub.s32 0, %v611
        %v613 = vrot.slane %v608, %v612
        %v614 = vlaneseq
        %v615 = vshrl.u32 %v614, 7
        %v616 = vsub.s32 1, %v615
        %v617 = vrot.slane %v608, %v616
        %v652 = vunpack.c.l.b16 %v576
        %v653 = vunpack.c.h.b16 %v576
        %v654 = vunpack.c.l.b16 %v577
        %v655 = vunpack.c.h.b16 %v577
        %v656 = vunpack.c.l.b16 %v578
        %v657 = vunpack.c.h.b16 %v578
        %v658 = vunpack.c.l.b16 %v579
        %v659 = vunpack.c.h.b16 %v579
        %v660 = vunpack.c.l.b16 %v580
        %v661 = vunpack.c.h.b16 %v580
        %v662 = vunpack.c.l.b16 %v581
        %v663 = vunpack.c.h.b16 %v581
        %v664 = vunpack.c.l.b16 %v582
        %v665 = vunpack.c.h.b16 %v582
        %v666 = vunpack.c.l.b16 %v583
        %v667 = vunpack.c.h.b16 %v583
        %v668 = vunpack.c.l.b16 %v584
        %v669 = vunpack.c.h.b16 %v584
        %v670 = vunpack.c.l.b16 %v585
        %v671 = vunpack.c.h.b16 %v585
        %v672 = vunpack.c.l.b16 %v586
        %v673 = vunpack.c.h.b16 %v586
        %v674 = vunpack.c.l.b16 %v587
        %v675 = vunpack.c.h.b16 %v587
        %v676 = vunpack.c.l.b16 %v588
        %v677 = vunpack.c.h.b16 %v588
        %v678 = vunpack.c.l.b16 %v589
        %v679 = vunpack.c.h.b16 %v589
        %v680 = vunpack.c.l.b16 %v590
        %v681 = vunpack.c.h.b16 %v590
        %v682 = vunpack.c.l.b16 %v591
        %v683 = vunpack.c.h.b16 %v591
        %v684 = vunpack.c.l.b16 %v592
        %v685 = vunpack.c.h.b16 %v592
        %v686 = vunpack.c.l.b16 %v593
        %v687 = vunpack.c.h.b16 %v593
        %v688 = vunpack.c.l.b16 %v594
        %v689 = vunpack.c.h.b16 %v594
        %v690 = vunpack.c.l.b16 %v595
        %v691 = vunpack.c.h.b16 %v595
        %v692 = vunpack.c.l.b16 %v596
        %v693 = vunpack.c.h.b16 %v596
        %v694 = vunpack.c.l.b16 %v597
        %v695 = vunpack.c.h.b16 %v597
        %v696 = vunpack.c.l.b16 %v598
        %v697 = vunpack.c.h.b16 %v598
        %v698 = vunpack.c.l.b16 %v599
        %v699 = vunpack.c.h.b16 %v599
        %v700 = vunpack.c.l.b16 %v600
        %v701 = vunpack.c.h.b16 %v600
        %v702 = vunpack.c.l.b16 %v601
        %v703 = vunpack.c.h.b16 %v601
        %v704 = vunpack.c.l.b16 %v602
        %v705 = vunpack.c.h.b16 %v602
        %v706 = vunpack.c.l.b16 %v603
        %v707 = vunpack.c.h.b16 %v603
        %v708 = vunpack.c.l.b16 %v604
        %v709 = vunpack.c.h.b16 %v604
        %v710 = vunpack.c.l.b16 %v605
        %v711 = vunpack.c.h.b16 %v605
        %v712 = vunpack.c.l.b16 %v606
        %v713 = vunpack.c.h.b16 %v606
        %v714 = vunpack.c.l.b16 %v607
        %v715 = vunpack.c.h.b16 %v607
        %v716 = vpack.c.b16 %v654, %v652
        %v717 = vpack.c.b16 %v655, %v653
        %v718 = vpack.c.b16 %v658, %v656
        %v719 = vpack.c.b16 %v659, %v657
        %v720 = vpack.c.b16 %v662, %v660
        %v721 = vpack.c.b16 %v663, %v661
        %v722 = vpack.c.b16 %v666, %v664
        %v723 = vpack.c.b16 %v667, %v665
        %v724 = vpack.c.b16 %v670, %v668
        %v725 = vpack.c.b16 %v671, %v669
        %v726 = vpack.c.b16 %v674, %v672
        %v727 = vpack.c.b16 %v675, %v673
        %v728 = vpack.c.b16 %v678, %v676
        %v729 = vpack.c.b16 %v679, %v677
        %v730 = vpack.c.b16 %v682, %v680
        %v731 = vpack.c.b16 %v683, %v681
        %v732 = vpack.c.b16 %v686, %v684
        %v733 = vpack.c.b16 %v687, %v685
        %v734 = vpack.c.b16 %v690, %v688
        %v735 = vpack.c.b16 %v691, %v689
        %v736 = vpack.c.b16 %v694, %v692
        %v737 = vpack.c.b16 %v695, %v693
        %v738 = vpack.c.b16 %v698, %v696
        %v739 = vpack.c.b16 %v699, %v697
        %v740 = vpack.c.b16 %v702, %v700
        %v741 = vpack.c.b16 %v703, %v701
        %v742 = vpack.c.b16 %v706, %v704
        %v743 = vpack.c.b16 %v707, %v705
        %v744 = vpack.c.b16 %v710, %v708
        %v745 = vpack.c.b16 %v711, %v709
        %v746 = vpack.c.b16 %v714, %v712
        %v747 = vpack.c.b16 %v715, %v713
        %780 = vmatprep.subr.bf16.mxu0 %v717
        %781 = vmatpush1.bf16.msra.mxu0 %v716
        %782 = vmatprep.subr.bf16.mxu0 %v719
        %783 = vmatpush1.bf16.msra.mxu0 %v718
        %784 = vmatprep.subr.bf16.mxu0 %v721
        %785 = vmatpush1.bf16.msra.mxu0 %v720
        %786 = vmatprep.subr.bf16.mxu0 %v723
        %787 = vmatpush1.bf16.msra.mxu0 %v722
        %788 = vmatprep.subr.bf16.mxu0 %v725
        %789 = vmatpush1.bf16.msra.mxu0 %v724
        %790 = vmatprep.subr.bf16.mxu0 %v727
        %791 = vmatpush1.bf16.msra.mxu0 %v726
        %792 = vmatprep.subr.bf16.mxu0 %v729
        %793 = vmatpush1.bf16.msra.mxu0 %v728
        %794 = vmatprep.subr.bf16.mxu0 %v731
        %795 = vmatpush1.bf16.msra.mxu0 %v730
        %796 = vmatprep.subr.bf16.mxu0 %v733
        %797 = vmatpush1.bf16.msra.mxu0 %v732
        %798 = vmatprep.subr.bf16.mxu0 %v735
        %799 = vmatpush1.bf16.msra.mxu0 %v734
        %800 = vmatprep.subr.bf16.mxu0 %v737
        %801 = vmatpush1.bf16.msra.mxu0 %v736
        %802 = vmatprep.subr.bf16.mxu0 %v739
        %803 = vmatpush1.bf16.msra.mxu0 %v738
        %804 = vmatprep.subr.bf16.mxu0 %v741
        %805 = vmatpush1.bf16.msra.mxu0 %v740
        %806 = vmatprep.subr.bf16.mxu0 %v743
        %807 = vmatpush1.bf16.msra.mxu0 %v742
        %808 = vmatprep.subr.bf16.mxu0 %v745
        %809 = vmatpush1.bf16.msra.mxu0 %v744
        %810 = vmatprep.subr.bf16.mxu0 %v747
        %811 = vmatpush1.bf16.msra.mxu0 %v746
        %812 = vmatprep.mubr.bf16.mxu0 %v575
        %813 = vmatmul.mubr.bf16.gmra.mrb[0].mxu0 %v574
        %v814 = vpop.f32.mrb[0].mxu0
        %v815 = vadd.f32 %v613, %v814
        %v816 = vpop.f32.mrb[0].mxu0
        %v817 = vadd.f32 %v617, %v816
        %v818 = vpop.f32.mrb[0].mxu0
        %v819 = vadd.f32 %v613, %v818
        %v820 = vpop.f32.mrb[0].mxu0
        %v821 = vadd.f32 %v617, %v820
        %822 = vdwg.mxu0
        %v823 = vmax.f32 %v815, 0.0
        %v824 = vmax.f32 %v817, 0.0
        %v825 = vmax.f32 %v819, 0.0
        %v826 = vmax.f32 %v821, 0.0
        %v827 = vpack.c.bf16 %v825, %v823
        %v828 = vpack.c.bf16 %v826, %v824
        %v829 = vld [vmem:[#allocation8] sm:$0xf]
        %v830 = vld [vmem:[#allocation8 + $0x4] sm:$0xf]
        %v831 = vld [vmem:[#allocation8 + $0x8] sm:$0xf]
        %v832 = vld [vmem:[#allocation8 + $0xc] sm:$0xf]
        %v833 = vld [vmem:[#allocation8 + $0x10] sm:$0xf]
        %v834 = vld [vmem:[#allocation8 + $0x14] sm:$0xf]
        %v835 = vld [vmem:[#allocation8 + $0x18] sm:$0xf]
        %v836 = vld [vmem:[#allocation8 + $0x1c] sm:$0xf]
        %v837 = vld [vmem:[#allocation8 + $0x20] sm:$0xf]
        %v838 = vld [vmem:[#allocation8 + $0x24] sm:$0xf]
        %v839 = vld [vmem:[#allocation8 + $0x28] sm:$0xf]
        %v840 = vld [vmem:[#allocation8 + $0x2c] sm:$0xf]
        %v841 = vld [vmem:[#allocation8 + $0x30] sm:$0xf]
        %v842 = vld [vmem:[#allocation8 + $0x34] sm:$0xf]
        %v843 = vld [vmem:[#allocation8 + $0x38] sm:$0xf]
        %v844 = vld [vmem:[#allocation8 + $0x3c] sm:$0xf]
        %v845 = vld [vmem:[#allocation8 + $0x40] sm:$0xf]
        %v846 = vld [vmem:[#allocation8 + $0x44] sm:$0xf]
        %v847 = vld [vmem:[#allocation8 + $0x48] sm:$0xf]
        %v848 = vld [vmem:[#allocation8 + $0x4c] sm:$0xf]
        %v849 = vld [vmem:[#allocation8 + $0x50] sm:$0xf]
        %v850 = vld [vmem:[#allocation8 + $0x54] sm:$0xf]
        %v851 = vld [vmem:[#allocation8 + $0x58] sm:$0xf]
        %v852 = vld [vmem:[#allocation8 + $0x5c] sm:$0xf]
        %v853 = vld [vmem:[#allocation8 + $0x60] sm:$0xf]
        %v854 = vld [vmem:[#allocation8 + $0x64] sm:$0xf]
        %v855 = vld [vmem:[#allocation8 + $0x68] sm:$0xf]
        %v856 = vld [vmem:[#allocation8 + $0x6c] sm:$0xf]
        %v857 = vld [vmem:[#allocation8 + $0x70] sm:$0xf]
        %v858 = vld [vmem:[#allocation8 + $0x74] sm:$0xf]
        %v859 = vld [vmem:[#allocation8 + $0x78] sm:$0xf]
        %v860 = vld [vmem:[#allocation8 + $0x7c] sm:$0xf]
        %v861 = vld [vmem:[%s6] sm:$0x1]
        %v863 = vlaneseq
        %v864 = vshrl.u32 %v863, 7
        %v865 = vsub.s32 0, %v864
        %v866 = vrot.slane %v861, %v865
        %v900 = vunpack.c.l.b16 %v829
        %v901 = vunpack.c.l.b16 %v830
        %v902 = vunpack.c.l.b16 %v831
        %v903 = vunpack.c.l.b16 %v832
        %v904 = vunpack.c.l.b16 %v833
        %v905 = vunpack.c.l.b16 %v834
        %v906 = vunpack.c.l.b16 %v835
        %v907 = vunpack.c.l.b16 %v836
        %v908 = vunpack.c.l.b16 %v837
        %v909 = vunpack.c.l.b16 %v838
        %v910 = vunpack.c.l.b16 %v839
        %v911 = vunpack.c.l.b16 %v840
        %v912 = vunpack.c.l.b16 %v841
        %v913 = vunpack.c.l.b16 %v842
        %v914 = vunpack.c.l.b16 %v843
        %v915 = vunpack.c.l.b16 %v844
        %v916 = vunpack.c.l.b16 %v845
        %v917 = vunpack.c.l.b16 %v846
        %v918 = vunpack.c.l.b16 %v847
        %v919 = vunpack.c.l.b16 %v848
        %v920 = vunpack.c.l.b16 %v849
        %v921 = vunpack.c.l.b16 %v850
        %v922 = vunpack.c.l.b16 %v851
        %v923 = vunpack.c.l.b16 %v852
        %v924 = vunpack.c.l.b16 %v853
        %v925 = vunpack.c.l.b16 %v854
        %v926 = vunpack.c.l.b16 %v855
        %v927 = vunpack.c.l.b16 %v856
        %v928 = vunpack.c.l.b16 %v857
        %v929 = vunpack.c.l.b16 %v858
        %v930 = vunpack.c.l.b16 %v859
        %v931 = vunpack.c.l.b16 %v860
        %v932 = vpack.c.b16 %v901, %v900
        %v933 = vpack.c.b16 %v903, %v902
        %v934 = vpack.c.b16 %v905, %v904
        %v935 = vpack.c.b16 %v907, %v906
        %v936 = vpack.c.b16 %v909, %v908
        %v937 = vpack.c.b16 %v911, %v910
        %v938 = vpack.c.b16 %v913, %v912
        %v939 = vpack.c.b16 %v915, %v914
        %v940 = vpack.c.b16 %v917, %v916
        %v941 = vpack.c.b16 %v919, %v918
        %v942 = vpack.c.b16 %v921, %v920
        %v943 = vpack.c.b16 %v923, %v922
        %v944 = vpack.c.b16 %v925, %v924
        %v945 = vpack.c.b16 %v927, %v926
        %v946 = vpack.c.b16 %v929, %v928
        %v947 = vpack.c.b16 %v931, %v930
        %964 = vmatprep.subr.bf16.mxu0 0
        %965 = vmatpush1.bf16.msra.mxu0 %v932
        %966 = vmatprep.subr.bf16.mxu0 0
        %967 = vmatpush1.bf16.msra.mxu0 %v933
        %968 = vmatprep.subr.bf16.mxu0 0
        %969 = vmatpush1.bf16.msra.mxu0 %v934
        %970 = vmatprep.subr.bf16.mxu0 0
        %971 = vmatpush1.bf16.msra.mxu0 %v935
        %972 = vmatprep.subr.bf16.mxu0 0
        %973 = vmatpush1.bf16.msra.mxu0 %v936
        %974 = vmatprep.subr.bf16.mxu0 0
        %975 = vmatpush1.bf16.msra.mxu0 %v937
        %976 = vmatprep.subr.bf16.mxu0 0
        %977 = vmatpush1.bf16.msra.mxu0 %v938
        %978 = vmatprep.subr.bf16.mxu0 0
        %979 = vmatpush1.bf16.msra.mxu0 %v939
        %980 = vmatprep.subr.bf16.mxu0 0
        %981 = vmatpush1.bf16.msra.mxu0 %v940
        %982 = vmatprep.subr.bf16.mxu0 0
        %983 = vmatpush1.bf16.msra.mxu0 %v941
        %984 = vmatprep.subr.bf16.mxu0 0
        %985 = vmatpush1.bf16.msra.mxu0 %v942
        %986 = vmatprep.subr.bf16.mxu0 0
        %987 = vmatpush1.bf16.msra.mxu0 %v943
        %988 = vmatprep.subr.bf16.mxu0 0
        %989 = vmatpush1.bf16.msra.mxu0 %v944
        %990 = vmatprep.subr.bf16.mxu0 0
        %991 = vmatpush1.bf16.msra.mxu0 %v945
        %992 = vmatprep.subr.bf16.mxu0 0
        %993 = vmatpush1.bf16.msra.mxu0 %v946
        %994 = vmatprep.subr.bf16.mxu0 0
        %995 = vmatpush1.bf16.msra.mxu0 %v947
        %996 = vmatprep.mubr.bf16.mxu0 %v828
        %997 = vmatmul.mubr.bf16.gmra.mrb[0].mxu0 %v827
        %v998 = vpop.f32.mrb[0].mxu0
        %v999 = vadd.f32 %v866, %v998
        %v1000 = vpop.f32.mrb[0].mxu0
        %v1001 = vpop.f32.mrb[0].mxu0
        %v1002 = vadd.f32 %v866, %v1001
        %v1003 = vpop.f32.mrb[0].mxu0
        %1004 = vdwg.mxu0
        %1005 = vmax.xlane.f32.xlu0 %v999
        %v1006 = vpop.xlane.xlu0 %1005
        %1007 = vmax.xlane.f32.xlu0 %v1002
        %v1008 = vpop.xlane.xlu0 %1007
        %v1009 = vsub.f32 %v999, %v1006
        %v1010 = vsub.f32 %v1002, %v1008
        %v1011 = vmul.f32 %v1009, 1.442695
        %v1012 = vpow.pop %v1011
        %v1013 = vmul.f32 %v1010, 1.442695
        %v1014 = vpow.pop %v1013
        %1015 = vadd.xlane.f32.xlu0 %v1012
        %v1016 = vpop.xlane.xlu0 %1015
        %1017 = vadd.xlane.f32.xlu0 %v1014
        %v1018 = vpop.xlane.xlu0 %1017
        %v1019 = vlog2.pop %v1016
        %v1020 = vmul.f32 %v1019, 0.6931472
        %v1021 = vlog2.pop %v1018
        %v1022 = vmul.f32 %v1021, 0.6931472
        %v1023 = vsub.f32 %v1009, %v1020
        %v1024 = vsub.f32 %v1010, %v1022
        %v1025 = vpack.c.bf16 %v1024, %v1023
        %v1027 = vunpack.c.l.b16 %v1025
        %v1028 = vunpack.c.h.b16 %v1025
        %v1029 = vpack.c.b16 %v1027, %v1027
        %v1030 = vpack.c.b16 %v1028, %v1028
        %1033 = vst [vmem:[%s348] sm:$0xf] %v1029
        %1034 = vst [vmem:[%s348 + $0x4] sm:$0xf] %v1030
        %s1035 = sand.u32 %s186, 1
        %s1036 = scalar_lea.sflag [#allocation4], %s1035
        %s1037 = sand.u32 %s186, 1
        %s1038 = smul.addr %s1037, 8
        %s1039 = scalar_lea.vmem [#allocation10], %s1038
        // Predicated region
        $region65: #{tpu_custom_call.1} parent=47 // pred_check
          %p1040 = pneg %p196
        $region66: #{tpu_custom_call.1} parent=47 // pred_check_branch
          %1042 = sbr.rel (%p1040) target = $region68
        $region67: #{tpu_custom_call.1} parent=47 // pred_region
          %s1043 = smul.u32 2, %s26
          %s1044 = ssub.s32 3, %s1043
          %p1045 = scmp.lt.s32.totalorder %s1044, 2
          %s1046 = scalar_select %p1045, %s1044, 2
          %s1047 = smul.u32 64, %s1046
          %s1049 = ssub.s32 128, %s1047
          %1050 = vsyncadd %s1036, %s1049
          %p1051 = scmp.ne.s32.totalorder 0, %s1047
          %s1052 = smul.addr %s1043, 64
          %s1053 = scalar_lea.hbm %s7, %s1052
          %s1054 = smul.u32 4, %s1046
          %s1055 = sshll.u32 %s1039, 4
          %s1056 = int_to_ptr.vmem [resolvable:$true] %s1055
          %s1057 = sshll.u32 %s1054, 4
          %1061 = dma.vmem_to_hbm [thread:$0]  (%p1051), %s1056, %s1057, %s1053, %s1036, 64, 64, 4
        $region68: #{tpu_custom_call.1} parent=47 // pred_fallthru
          _
      $region48: #{tpu_custom_call.1} parent=5 // pred_fallthru
        _
      %p1062 = scmp.le.s32.totalorder 2, %s21
      // Predicated region
      $region69: #{tpu_custom_call.1} parent=5 // pred_check
        %p1063 = pneg %p1062
      $region70: #{tpu_custom_call.1} parent=5 // pred_check_branch
        %1065 = sbr.rel (%p1063) target = $region72
      $region71: #{tpu_custom_call.1} parent=5 // pred_region
        %s1066 = ssub.s32 %s21, 2
        // Predicated region
        $region73: #{tpu_custom_call.1} parent=71 // pred_check
          %p1067 = pneg %p202
        $region74: #{tpu_custom_call.1} parent=71 // pred_check_branch
          %1069 = sbr.rel (%p1067) target = $region76
        $region75: #{tpu_custom_call.1} parent=71 // pred_region
          %s1070 = sand.u32 %s187, 1
          %s1071 = scalar_lea.sflag [#allocation4], %s1070
          %s1072 = sand.u32 %s187, 1
          %s1073 = smul.addr %s1072, 8
          %s1074 = scalar_lea.vmem [#allocation10], %s1073
          %1075 = dma.done %s1071, 128
        $region76: #{tpu_custom_call.1} parent=71 // pred_fallthru
          _
      $region72: #{tpu_custom_call.1} parent=5 // pred_fallthru
        _
    $region6: #{tpu_custom_call.1} parent=1 // loop_footer
      %s25 = sadd.s32 1, %s21
    $region7: #{tpu_custom_call.1} parent=1 // loop_footer_branch
      %20 = sbr.rel target = $region3
    $region8: #{tpu_custom_call.1} parent=1 // loop_exit
      _
    %1076 = vsyncpa [#allocation3], 1
    %s1077 = scalar_lea.sflag [#allocation3], 1
    %1078 = vsyncpa %s1077, 1
    %1079 = vsyncpa [#allocation6], 1
    %1080 = vsyncpa [#allocation9], 1
    %1081 = vsyncpa [#allocation4], 1
    %s1082 = scalar_lea.sflag [#allocation4], 1
    %1083 = vsyncpa %s1082, 1

</llo_original>
